<compile_context>
chip_gen: v7x
topology: tpu7x:2x2x1
jax: 0.10.0
libtpu: 0.0.40
codegen_flags: <defaults>
</compile_context>

<pallas_src>
import jax
import jax.numpy as jnp
from jax.experimental import pallas as pl
from jax.experimental.pallas import tpu as pltpu


def _softmax_rows_kernel(x_ref, o_ref):
    # One grid step sees a (block_rows, HW) tile; softmax over the last axis.
    x = x_ref[...].astype(jnp.float32)
    m = jnp.max(x, axis=-1, keepdims=True)
    e = jnp.exp(x - m)
    s = jnp.sum(e, axis=-1, keepdims=True)
    # Approx reciprocal on the otherwise-idle EUP slot; one Newton step
    # (r <- r * (2 - s*r)) on the VALU restores ~full f32 accuracy.  This is
    # perf-neutral (kernel is HBM-bound) but kept for accuracy.
    r = pl.reciprocal(s, approx=True)
    r = r * (2.0 - s * r)
    o_ref[...] = (e * r).astype(o_ref.dtype)


def _round_up(x: int, m: int) -> int:
    return (x + m - 1) // m * m


def _vmem_capacity_bytes() -> int:
    """Physical VMEM per TensorCore; falls back to the v5e/v6e 128 MiB."""
    try:
        info = pltpu.get_tpu_info()
        cap = getattr(info, "vmem_capacity_bytes", None)
        if cap:
            return int(cap)
    except Exception:
        pass
    return 128 << 20


def channel_norm(
    featmap: jax.Array,
    *,
    block_rows: int | None = None,
    shard_rows_across_cores: bool = False,
) -> jax.Array:
    """Equivalent of ChannelNorm.forward: (N,C,H,W) -> softmax over H*W -> (N,C,H*W)."""
    n, c, h, w = featmap.shape
    hw = h * w
    rows = n * c
    dtype = featmap.dtype
    itemsize = jnp.dtype(dtype).itemsize
    # Sublane packing granularity per dtype width.
    sublane = {1: 32, 2: 16, 4: 8}.get(itemsize, 8)

    x2d = featmap.reshape(rows, hw)  # contiguous reshape: no HBM pass

    # ---- VMEM model: lane-padded, double-buffered I/O + f32 temporaries ----
    hw_padded = _round_up(hw, 128)
    # 2x input (double buffer) + 2x output (double buffer) + ~2 f32 temps (x, e).
    per_row_bytes = (2 * itemsize + 2 * itemsize + 2 * 4) * hw_padded

    vmem_cap = _vmem_capacity_bytes()
    vmem_budget = int(vmem_cap * 0.28)  # ~18 MiB on v7x, ~36 MiB on v5e/v6e

    # ---- tile sizing (mem-bound kernel) ----
    if block_rows is None:
        block_rows = max(sublane, vmem_budget // max(per_row_bytes, 1))
    # Keep the pipeline fed: aim for >= ~8 grid steps when the row count allows
    # (per-step overhead is only ~0.35 us; roofline saturates at modest tiles).
    block_rows = min(block_rows, max(sublane, _round_up(pl.cdiv(rows, 8), sublane)))
    # Align to the dtype's sublane packing.
    block_rows = max(sublane, (block_rows // sublane) * sublane)
    # Never request a tile taller than the (sublane-rounded) row count.  If the
    # whole problem is shorter than one sublane group, take all rows — a block
    # equal to the full array dim is always a legal layout.
    if rows < sublane:
        block_rows = rows
    else:
        block_rows = min(block_rows, _round_up(rows, sublane))

    # Partial last block is fine: rows are independent, Pallas only writes the
    # in-bounds portion of the output block back to HBM.
    grid = (pl.cdiv(rows, block_rows),)

    # NOTE: this keeps a full (block_rows, HW) row tile resident in VMEM.  For
    # extremely large H*W (single-row tile exceeding the VMEM budget) an
    # online-softmax variant tiling the H*W axis would be needed; typical
    # feature maps are far below that.  Likewise, for very small H*W (7x7 etc.)
    # a lane-dense transposed layout would cut the up-to-2.6x lane-padding
    # waste; the VMEM math above at least accounts for that padding.

    footprint = block_rows * per_row_bytes
    vmem_limit = int(footprint + footprint // 4 + (4 << 20))
    vmem_limit = max(vmem_limit, 16 << 20)
    vmem_limit = min(vmem_limit, vmem_cap // 2)

    # On 2-TensorCore chips (v7x) the row-block loop can be sharded across
    # cores with CORE_PARALLEL; default stays PARALLEL for single-TC v5e/v6e.
    row_semantics = (
        pltpu.CORE_PARALLEL if shard_rows_across_cores else pltpu.PARALLEL
    )

    cost = pl.CostEstimate(
        flops=5 * rows * hw,
        transcendentals=rows * hw,
        bytes_accessed=2 * rows * hw * itemsize,
    )

    out2d = pl.pallas_call(
        _softmax_rows_kernel,
        out_shape=jax.ShapeDtypeStruct((rows, hw), dtype),
        grid_spec=pltpu.PrefetchScalarGridSpec(
            num_scalar_prefetch=0,
            grid=grid,
            in_specs=[pl.BlockSpec((block_rows, hw), lambda i: (i, 0))],
            out_specs=pl.BlockSpec((block_rows, hw), lambda i: (i, 0)),
        ),
        compiler_params=pltpu.CompilerParams(
            dimension_semantics=(row_semantics,),
            vmem_limit_bytes=vmem_limit,
        ),
        cost_estimate=cost,
    )(x2d)

    return out2d.reshape(n, c, hw)


if __name__ == "__main__":
    def _ref(x):
        nn, cc, hh, ww = x.shape
        return jax.nn.softmax(
            x.reshape(nn, cc, hh * ww).astype(jnp.float32), axis=-1
        )

    # 1) Canonical small shape (f32).
    key = jax.random.PRNGKey(0)
    x = jax.random.normal(key, (2, 4, 16, 16), dtype=jnp.float32)
    out = jax.block_until_ready(channel_norm(x))
    assert out.shape == (2, 4, 256)
    assert jnp.allclose(out, _ref(x), atol=1e-6, rtol=1e-5)

    # 2) Odd shape: rows % block_rows != 0 (exercises the partial tail block)
    #    and H*W not a multiple of 128 (exercises lane padding).
    x2 = jax.random.normal(jax.random.PRNGKey(1), (3, 5, 7, 9), dtype=jnp.float32)
    out2 = jax.block_until_ready(channel_norm(x2))
    assert out2.shape == (3, 5, 63)
    assert jnp.allclose(out2, _ref(x2), atol=1e-6, rtol=1e-5)

    # 3) bf16 activations (looser tolerance for bf16 output rounding).
    x3 = jax.random.normal(jax.random.PRNGKey(2), (2, 4, 16, 16), dtype=jnp.bfloat16)
    out3 = jax.block_until_ready(channel_norm(x3))
    assert out3.dtype == jnp.bfloat16
    assert jnp.allclose(out3.astype(jnp.float32), _ref(x3), atol=5e-3, rtol=2e-2)

    print("KERNEL_OK")
</pallas_src>

<mosaic_0001>
module attributes {stable_mosaic.version = 11 : i64} {
  func.func @_softmax_rows_kernel(%arg0: i32, %arg1: memref<8x256xf32, #tpu.memory_space<vmem>>, %arg2: memref<8x256xf32, #tpu.memory_space<vmem>>) attributes {dimension_semantics = [#tpu.dimension_semantics<parallel>], iteration_bounds = array<i64: 1>, scalar_prefetch = 0 : i64, scratch_operands = 0 : i64, tpu.core_type = #tpu.core_type<tc>, window_params = [{transform_indices = @transform_0, window_bounds = array<i64: 8, 256>}, {transform_indices = @transform_1, window_bounds = array<i64: 8, 256>}]} {
    %c0 = arith.constant 0 : index
    %c0_0 = arith.constant 0 : index
    %0 = vector.load %arg1[%c0, %c0_0] : memref<8x256xf32, #tpu.memory_space<vmem>>, vector<8x256xf32>
    %cst = arith.constant dense<0xFF800000> : vector<8xf32>
    %1 = vector.multi_reduction <maximumf>, %0, %cst [1] : vector<8x256xf32> to vector<8xf32>
    %2 = vector.shape_cast %1 : vector<8xf32> to vector<8x1xf32>
    %3 = vector.broadcast %2 : vector<8x1xf32> to vector<8x256xf32>
    %4 = arith.subf %0, %3 : vector<8x256xf32>
    %5 = math.exp %4 : vector<8x256xf32>
    %cst_1 = arith.constant dense<0.000000e+00> : vector<8xf32>
    %6 = vector.multi_reduction <add>, %5, %cst_1 [1] : vector<8x256xf32> to vector<8xf32>
    %7 = vector.shape_cast %6 : vector<8xf32> to vector<8x1xf32>
    %8 = tpu.reciprocal %7 {approx = true} : vector<8x1xf32> -> vector<8x1xf32>
    %9 = arith.mulf %7, %8 : vector<8x1xf32>
    %cst_2 = arith.constant 2.000000e+00 : f32
    %10 = vector.broadcast %cst_2 : f32 to vector<8x1xf32>
    %11 = arith.subf %10, %9 : vector<8x1xf32>
    %12 = arith.mulf %8, %11 : vector<8x1xf32>
    %13 = vector.broadcast %12 : vector<8x1xf32> to vector<8x256xf32>
    %14 = arith.mulf %5, %13 : vector<8x256xf32>
    %c0_3 = arith.constant 0 : index
    %c0_4 = arith.constant 0 : index
    %15 = vector.load %arg2[%c0_3, %c0_4] : memref<8x256xf32, #tpu.memory_space<vmem>>, vector<8x256xf32>
    tpu.vector_store %arg2[%c0_3, %c0_4], %14 {strides = array<i32>} : memref<8x256xf32, #tpu.memory_space<vmem>>, vector<8x256xf32>,
    return
  }
  func.func @transform_0(%arg0: i32) -> (i32, i32) {
    %c0_i32 = arith.constant 0 : i32
    %c0_i32_0 = arith.constant 0 : i32
    return %arg0, %c0_i32 : i32, i32
  }
  func.func @transform_1(%arg0: i32) -> (i32, i32) {
    %c0_i32 = arith.constant 0 : i32
    %c0_i32_0 = arith.constant 0 : i32
    return %arg0, %c0_i32 : i32, i32
  }
}

</mosaic_0001>

<llo_original>
// kernel: tpu_custom_call.1
$region0: #{tpu_custom_call.1}
  #allocation0 [shape = 'u32[]', space=smem, size = 0x4, offset = 0x4, fixed_abs, tag = 'smem constant byte address 0x4 - core index']
  #allocation1 [shape = 'u32[144,128]{1,0:T(1,128)}', space=vmem, size = 0x12000, scoped, tag = 'internal scratch']
  %s0 = inlined_call_operand.hbm [shape: f32[8,256], index: 0, kind: input, shape index: {}]
  %s1 = inlined_call_operand.hbm [shape: f32[8,256], index: 1, kind: output, shape index: {}]
  %s2 = sld [smem:[#allocation0]]
  $region18: #{tpu_custom_call.1} parent=0
    _
  %s4 = ssub.s32 1, %s2
  %s5 = scalar_select 0, %s4, %s2
  $region1: #{tpu_custom_call.1} parent=0
    #allocation2 [shape = 'u8[8192]{0}', space=vmem, size = 0x2000, scoped, tag = 'input window, operand 0, single buffered']
    #allocation3 [shape = 's32[1]{0}', space=sflag, size = 0x4, scoped, tag = 'scoped memory for tpu_custom_call.1']
    #allocation4 [shape = 's32[1]{0}', space=sflag, size = 0x4, scoped, tag = 'scoped memory for tpu_custom_call.1']
    #allocation5 [shape = 'u8[8192]{0}', space=vmem, size = 0x2000, scoped, tag = 'output window, operand 0, single buffered']
    %6 = vsyncpa [#allocation3], 0
    %7 = vsyncpa [#allocation4], 0
    // Predicated region
    $region2: #{tpu_custom_call.1} parent=1 // pred_check
      _
    $region3: #{tpu_custom_call.1} parent=1 // pred_check_branch
      %9 = sbr.rel (0) target = $region5
    $region4: #{tpu_custom_call.1} parent=1 // pred_region
      %s11 = ssub.s32 256, 256
      %12 = vsyncadd [#allocation3], %s11
      %s14 = sshll.u32 [#allocation2], 4
      %s15 = int_to_ptr.vmem [resolvable:$true] %s14
      %17 = dma.hbm_to_vmem [thread:$0]  %s0, 256, %s15, [#allocation3]
    $region5: #{tpu_custom_call.1} parent=1 // pred_fallthru
      _
    // Predicated region
    $region6: #{tpu_custom_call.1} parent=1 // pred_check
      _
    $region7: #{tpu_custom_call.1} parent=1 // pred_check_branch
      %19 = sbr.rel (0) target = $region9
    $region8: #{tpu_custom_call.1} parent=1 // pred_region
      %20 = dma.done [#allocation3], 256
    $region9: #{tpu_custom_call.1} parent=1 // pred_fallthru
      _
    %v21 = vld [vmem:[#allocation2] sm:$0xff]
    %v22 = vld [vmem:[#allocation2 + $0x8] sm:$0xff]
    %v23 = vmax.f32 %v21, %v22
    %24 = vmax.xlane.f32.xlu0 %v23
    %v25 = vpop.xlane.xlu0 %24
    %v26 = vsub.f32 %v21, %v25
    %v27 = vsub.f32 %v22, %v25
    %v28 = vmul.f32 %v26, 1.442695
    %v29 = vpow.pop %v28
    %v30 = vmul.f32 %v27, 1.442695
    %v31 = vpow.pop %v30
    %v32 = vadd.f32 %v29, %v31
    %33 = vadd.xlane.f32.xlu0 %v32
    %v34 = vpop.xlane.xlu0 %33
    %v35 = vrcp.pop %v34
    %v36 = vmul.f32 %v34, %v35
    %v37 = vsub.f32 2.0, %v36
    %v38 = vmul.f32 %v35, %v37
    %v39 = vmul.f32 %v29, %v38
    %v40 = vmul.f32 %v31, %v38
    %41 = vst [vmem:[#allocation5] sm:$0xff] %v39
    %42 = vst [vmem:[#allocation5 + $0x8] sm:$0xff] %v40
    // Predicated region
    $region10: #{tpu_custom_call.1} parent=1 // pred_check
      _
    $region11: #{tpu_custom_call.1} parent=1 // pred_check_branch
      %44 = sbr.rel (0) target = $region13
    $region12: #{tpu_custom_call.1} parent=1 // pred_region
      %s46 = ssub.s32 256, 256
      %47 = vsyncadd [#allocation4], %s46
      %s49 = sshll.u32 [#allocation5], 4
      %s50 = int_to_ptr.vmem [resolvable:$true] %s49
      %52 = dma.vmem_to_hbm [thread:$0]  %s50, 256, %s1, [#allocation4]
    $region13: #{tpu_custom_call.1} parent=1 // pred_fallthru
      _
    // Predicated region
    $region14: #{tpu_custom_call.1} parent=1 // pred_check
      _
    $region15: #{tpu_custom_call.1} parent=1 // pred_check_branch
      %54 = sbr.rel (0) target = $region17
    $region16: #{tpu_custom_call.1} parent=1 // pred_region
      %55 = dma.done [#allocation4], 256
    $region17: #{tpu_custom_call.1} parent=1 // pred_fallthru
      _
    %56 = vsyncpa [#allocation3], 1
    %57 = vsyncpa [#allocation4], 1

</llo_original>
